<compile_context>
chip_gen: v7x
topology: tpu7x:2x2x1
jax: 0.10.0
libtpu: 0.0.40
codegen_flags: <defaults>
</compile_context>

<pallas_src>
import functools

import jax
import jax.numpy as jnp
from jax.experimental import pallas as pl
from jax.experimental.pallas import tpu as pltpu


def _leaky(v):
    # LeakyReLU(0.2): max(v, 0.2*v) == v if v >= 0 else 0.2*v.
    return jnp.maximum(v, 0.2 * v)


def compare_norm_kernel(p_ref, w_ref, x_ref, o_ref, *, fuse):
    x = x_ref[0]                       # (C, tHW)

    # Packed per-(n,c) parameters, each (C, 1).
    a_z = p_ref[0, 0]                  # inv_std * gamma
    b_z = p_ref[0, 1]                  # beta - mean * inv_std * gamma
    scale = p_ref[0, 2]                # _scale
    bias = p_ref[0, 3]                 # _bias
    cbias = p_ref[0, 4]                # 1x1 conv bias

    # Channel-wise L2 normalization per spatial location (reduction over C,
    # i.e. over sublanes -- independent of the HW tiling).  rsqrt, no divide.
    ss = jnp.sum(x * x, axis=0, keepdims=True)                  # (1, tHW)
    inv_l2 = jax.lax.rsqrt(jnp.maximum(ss, 1e-5))

    hx = _leaky(x)                                              # x branch
    hy = _leaky((x * inv_l2) * scale + bias)                    # y*scale+bias branch
    hz = _leaky(x * a_z + b_z)                                  # InstanceNorm branch

    if fuse:
        # Single MXU pass with K = 3C.  w_ref is (C, 3C) = [Wx | Wy | Wz].
        h = jnp.concatenate([hx, hy, hz], axis=0)               # (3C, tHW)
        acc = jnp.dot(w_ref[...], h, preferred_element_type=jnp.float32)
    else:
        # Tiny-C fallback: three matmuls from one packed (3, C, C) weight.
        acc = jnp.dot(w_ref[0], hx, preferred_element_type=jnp.float32)
        acc = acc + jnp.dot(w_ref[1], hy, preferred_element_type=jnp.float32)
        acc = acc + jnp.dot(w_ref[2], hz, preferred_element_type=jnp.float32)

    o_ref[0] = _leaky(acc + cbias).astype(o_ref.dtype)


def _pick_hw_tile(hw, c, lane_target=8192, budget_bytes=12 * 1024 * 1024):
    """Largest lane tile <= target that divides HW and is a multiple of 128.

    budget covers the double-buffered f32 input+output blocks
    (2 * 2 * c * t * 4 bytes), keeping the kernel inside v7x's 64 MiB VMEM.
    """
    c_pad = max(8, c)                           # sublane padding for tiny C
    max_t = max(128, budget_bytes // (16 * c_pad))
    target = min(lane_target, max_t)
    if hw <= target:
        return hw
    t = (target // 128) * 128
    while t >= 128:
        if hw % t == 0:
            return t
        t -= 128
    return hw   # no suitable divisor; fall back to the full row


def compare_norm2d2(x, scale, bias, gamma, beta, w, b):
    """x: (N, C, H, W); scale/bias: (1,C,1,1); gamma/beta: (C,);
    w: (C, 3C, 1, 1) conv weight; b: (C,) conv bias."""
    N, C, H, W = x.shape
    HW = H * W
    x2 = x.reshape(N, C, HW)
    xf = x2.astype(jnp.float32)

    # ---- Prepass (plain JAX): InstanceNorm stats folded with the affine. ----
    mean = jnp.mean(xf, axis=2)                                # (N, C)
    var = jnp.mean(xf * xf, axis=2) - mean * mean              # biased variance
    inv_std = jax.lax.rsqrt(var + 1e-5)
    a_z = inv_std * gamma.reshape(1, C)
    b_z = beta.reshape(1, C) - mean * a_z

    # Pack the five per-(n,c) scalars into one (N, 5, C, 1) array.
    p = jnp.stack(
        [a_z, b_z,
         jnp.broadcast_to(scale.reshape(1, C), (N, C)),
         jnp.broadcast_to(bias.reshape(1, C), (N, C)),
         jnp.broadcast_to(b.reshape(1, C), (N, C))],
        axis=1).astype(jnp.float32)[..., None]                 # (N, 5, C, 1)

    # ---- Weight packing (channel order in the conv is [x | y | z]). ----
    fuse = (C % 8 == 0)
    wflat = w.reshape(C, 3 * C).astype(jnp.float32)
    if fuse:
        w_in = wflat                                           # (C, 3C) lane-dense
        w_spec = pl.BlockSpec((C, 3 * C), lambda n, t: (0, 0))
    else:
        w_in = wflat.reshape(C, 3, C).transpose(1, 0, 2)       # (3, C, C)
        w_spec = pl.BlockSpec((3, C, C), lambda n, t: (0, 0, 0))

    # ---- HW tiling / VMEM budget. ----
    thw = _pick_hw_tile(HW, C)
    n_t = HW // thw
    grid = (N, n_t)

    block_bytes = max(8, C) * thw * 4
    vmem_needed = 4 * block_bytes + int(w_in.size + p[0].size) * 4
    vmem_limit = int(min(48 * 1024 * 1024, max(32 * 1024 * 1024, 2 * vmem_needed)))

    cost = pl.CostEstimate(
        flops=int(6 * C * C * HW * N + 12 * N * C * HW),
        transcendentals=int(N * HW),
        bytes_accessed=int(8 * N * C * HW + 4 * (int(w_in.size) + int(p.size))),
    )

    out = pl.pallas_call(
        functools.partial(compare_norm_kernel, fuse=fuse),
        out_shape=jax.ShapeDtypeStruct((N, C, HW), x.dtype),
        grid_spec=pltpu.PrefetchScalarGridSpec(
            num_scalar_prefetch=0,
            grid=grid,
            in_specs=[
                pl.BlockSpec((1, 5, C, 1), lambda n, t: (n, 0, 0, 0)),  # packed params
                w_spec,                                                 # packed weight
                pl.BlockSpec((1, C, thw), lambda n, t: (n, 0, t)),      # x tile
            ],
            out_specs=pl.BlockSpec((1, C, thw), lambda n, t: (n, 0, t)),
        ),
        compiler_params=pltpu.CompilerParams(
            dimension_semantics=("parallel", "parallel"),
            vmem_limit_bytes=vmem_limit),
        cost_estimate=cost,
    )(p, w_in, x2)
    return out.reshape(N, C, H, W)


def reference(x, scale, bias, gamma, beta, w, b):
    # Pure-JAX reference mirroring the PyTorch forward.
    mean = jnp.mean(x, axis=(2, 3), keepdims=True)
    var = jnp.mean((x - mean) ** 2, axis=(2, 3), keepdims=True)
    z = (x - mean) / jnp.sqrt(var + 1e-5)
    z = z * gamma.reshape(1, -1, 1, 1) + beta.reshape(1, -1, 1, 1)
    y = x / jnp.sqrt(jnp.clip(jnp.sum(x ** 2, axis=1, keepdims=True), 1e-5, None))
    y = y * scale + bias
    h = jnp.concatenate([x, y, z], axis=1)
    h = jnp.where(h >= 0, h, 0.2 * h)
    out = jnp.einsum('oc,nchw->nohw', w.reshape(w.shape[0], -1), h)
    out = out + b.reshape(1, -1, 1, 1)
    return jnp.where(out >= 0, out, 0.2 * out)


if __name__ == "__main__":
    key = jax.random.PRNGKey(0)
    N, C, H, W = 2, 4, 16, 16
    k = jax.random.split(key, 5)

    x = jax.random.normal(k[0], (N, C, H, W), jnp.float32)

    # Parameters (deterministic, matching __init__ shapes/semantics):
    scale = 1.0 + jax.random.normal(k[1], (1, C, 1, 1), jnp.float32)   # N(1, 1)
    bias = jax.random.normal(k[2], (1, C, 1, 1), jnp.float32)          # N(0, 1)
    gamma = jnp.ones((C,), jnp.float32)    # InstanceNorm2d affine weight default
    beta = jnp.zeros((C,), jnp.float32)    # InstanceNorm2d affine bias default
    fan_in = 3 * C
    bound = 1.0 / (fan_in ** 0.5)
    w = jax.random.uniform(k[3], (C, 3 * C, 1, 1), jnp.float32, -bound, bound)
    b = jax.random.uniform(k[4], (C,), jnp.float32, -bound, bound)

    out = compare_norm2d2(x, scale, bias, gamma, beta, w, b)
    jax.block_until_ready(out)

    ref = reference(x, scale, bias, gamma, beta, w, b)
    assert out.shape == (N, C, H, W)
    assert jnp.allclose(out, ref, atol=1e-4, rtol=1e-4), (
        float(jnp.max(jnp.abs(out - ref))))
    print("KERNEL_OK")
</pallas_src>

<mosaic_0001>
module attributes {stable_mosaic.version = 11 : i64} {
  func.func @compare_norm_kernel(%arg0: i32, %arg1: i32, %arg2: memref<1x5x4x1xf32, #tpu.memory_space<vmem>>, %arg3: memref<3x4x4xf32, #tpu.memory_space<vmem>>, %arg4: memref<1x4x256xf32, #tpu.memory_space<vmem>>, %arg5: memref<1x4x256xf32, #tpu.memory_space<vmem>>) attributes {dimension_semantics = [#tpu.dimension_semantics<parallel>, #tpu.dimension_semantics<parallel>], iteration_bounds = array<i64: 2, 1>, scalar_prefetch = 0 : i64, scratch_operands = 0 : i64, tpu.core_type = #tpu.core_type<tc>, window_params = [{transform_indices = @transform_0, window_bounds = array<i64: 1, 5, 4, 1>}, {pipeline_mode = #tpu.pipeline_mode<synchronous>, transform_indices = @transform_1, window_bounds = array<i64: 3, 4, 4>}, {transform_indices = @transform_2, window_bounds = array<i64: 1, 4, 256>}, {transform_indices = @transform_3, window_bounds = array<i64: 1, 4, 256>}]} {
    %c0 = arith.constant 0 : index
    %c0_0 = arith.constant 0 : index
    %c0_1 = arith.constant 0 : index
    %0 = vector.load %arg4[%c0, %c0_0, %c0_1] : memref<1x4x256xf32, #tpu.memory_space<vmem>>, vector<1x4x256xf32>
    %1 = vector.shape_cast %0 : vector<1x4x256xf32> to vector<4x256xf32>
    %c0_2 = arith.constant 0 : index
    %c0_3 = arith.constant 0 : index
    %c0_4 = arith.constant 0 : index
    %c0_5 = arith.constant 0 : index
    %2 = vector.load %arg2[%c0_2, %c0_3, %c0_4, %c0_5] : memref<1x5x4x1xf32, #tpu.memory_space<vmem>>, vector<1x1x4x1xf32>
    %3 = vector.shape_cast %2 : vector<1x1x4x1xf32> to vector<4x1xf32>
    %c0_6 = arith.constant 0 : index
    %c1 = arith.constant 1 : index
    %c0_7 = arith.constant 0 : index
    %c0_8 = arith.constant 0 : index
    %4 = vector.load %arg2[%c0_6, %c1, %c0_7, %c0_8] : memref<1x5x4x1xf32, #tpu.memory_space<vmem>>, vector<1x1x4x1xf32>
    %5 = vector.shape_cast %4 : vector<1x1x4x1xf32> to vector<4x1xf32>
    %c0_9 = arith.constant 0 : index
    %c2 = arith.constant 2 : index
    %c0_10 = arith.constant 0 : index
    %c0_11 = arith.constant 0 : index
    %6 = vector.load %arg2[%c0_9, %c2, %c0_10, %c0_11] : memref<1x5x4x1xf32, #tpu.memory_space<vmem>>, vector<1x1x4x1xf32>
    %7 = vector.shape_cast %6 : vector<1x1x4x1xf32> to vector<4x1xf32>
    %c0_12 = arith.constant 0 : index
    %c3 = arith.constant 3 : index
    %c0_13 = arith.constant 0 : index
    %c0_14 = arith.constant 0 : index
    %8 = vector.load %arg2[%c0_12, %c3, %c0_13, %c0_14] : memref<1x5x4x1xf32, #tpu.memory_space<vmem>>, vector<1x1x4x1xf32>
    %9 = vector.shape_cast %8 : vector<1x1x4x1xf32> to vector<4x1xf32>
    %c0_15 = arith.constant 0 : index
    %c4 = arith.constant 4 : index
    %c0_16 = arith.constant 0 : index
    %c0_17 = arith.constant 0 : index
    %10 = vector.load %arg2[%c0_15, %c4, %c0_16, %c0_17] : memref<1x5x4x1xf32, #tpu.memory_space<vmem>>, vector<1x1x4x1xf32>
    %11 = vector.shape_cast %10 : vector<1x1x4x1xf32> to vector<4x1xf32>
    %12 = arith.mulf %1, %1 : vector<4x256xf32>
    %cst = arith.constant dense<0.000000e+00> : vector<256xf32>
    %13 = vector.multi_reduction <add>, %12, %cst [0] : vector<4x256xf32> to vector<256xf32>
    %14 = vector.shape_cast %13 : vector<256xf32> to vector<1x256xf32>
    %cst_18 = arith.constant 9.99999974E-6 : f32
    %15 = vector.broadcast %cst_18 : f32 to vector<1x256xf32>
    %16 = arith.maximumf %14, %15 : vector<1x256xf32>
    %17 = math.rsqrt %16 : vector<1x256xf32>
    %cst_19 = arith.constant 2.000000e-01 : f32
    %18 = vector.broadcast %cst_19 : f32 to vector<4x256xf32>
    %19 = arith.mulf %18, %1 : vector<4x256xf32>
    %20 = arith.maximumf %1, %19 : vector<4x256xf32>
    %21 = vector.broadcast %17 : vector<1x256xf32> to vector<4x256xf32>
    %22 = arith.mulf %1, %21 : vector<4x256xf32>
    %23 = vector.broadcast %7 : vector<4x1xf32> to vector<4x256xf32>
    %24 = arith.mulf %22, %23 : vector<4x256xf32>
    %25 = vector.broadcast %9 : vector<4x1xf32> to vector<4x256xf32>
    %26 = arith.addf %24, %25 : vector<4x256xf32>
    %cst_20 = arith.constant 2.000000e-01 : f32
    %27 = vector.broadcast %cst_20 : f32 to vector<4x256xf32>
    %28 = arith.mulf %27, %26 : vector<4x256xf32>
    %29 = arith.maximumf %26, %28 : vector<4x256xf32>
    %30 = vector.broadcast %3 : vector<4x1xf32> to vector<4x256xf32>
    %31 = arith.mulf %1, %30 : vector<4x256xf32>
    %32 = vector.broadcast %5 : vector<4x1xf32> to vector<4x256xf32>
    %33 = arith.addf %31, %32 : vector<4x256xf32>
    %cst_21 = arith.constant 2.000000e-01 : f32
    %34 = vector.broadcast %cst_21 : f32 to vector<4x256xf32>
    %35 = arith.mulf %34, %33 : vector<4x256xf32>
    %36 = arith.maximumf %33, %35 : vector<4x256xf32>
    %c0_22 = arith.constant 0 : index
    %c0_23 = arith.constant 0 : index
    %c0_24 = arith.constant 0 : index
    %37 = vector.load %arg3[%c0_22, %c0_23, %c0_24] : memref<3x4x4xf32, #tpu.memory_space<vmem>>, vector<1x4x4xf32>
    %38 = vector.shape_cast %37 : vector<1x4x4xf32> to vector<4x4xf32>
    %cst_25 = arith.constant dense<0.000000e+00> : vector<4x256xf32>
    %39 = tpu.matmul %38, %20, %cst_25 {dimension_numbers = #tpu.dot_dimension_numbers<[1], [0], [0], [1], [0, 0, 1, 1], [], []>} : vector<4x4xf32>, vector<4x256xf32>, vector<4x256xf32> -> vector<4x256xf32>
    %c1_26 = arith.constant 1 : index
    %c0_27 = arith.constant 0 : index
    %c0_28 = arith.constant 0 : index
    %40 = vector.load %arg3[%c1_26, %c0_27, %c0_28] : memref<3x4x4xf32, #tpu.memory_space<vmem>>, vector<1x4x4xf32>
    %41 = vector.shape_cast %40 : vector<1x4x4xf32> to vector<4x4xf32>
    %cst_29 = arith.constant dense<0.000000e+00> : vector<4x256xf32>
    %42 = tpu.matmul %41, %29, %cst_29 {dimension_numbers = #tpu.dot_dimension_numbers<[1], [0], [0], [1], [0, 0, 1, 1], [], []>} : vector<4x4xf32>, vector<4x256xf32>, vector<4x256xf32> -> vector<4x256xf32>
    %43 = arith.addf %39, %42 : vector<4x256xf32>
    %c2_30 = arith.constant 2 : index
    %c0_31 = arith.constant 0 : index
    %c0_32 = arith.constant 0 : index
    %44 = vector.load %arg3[%c2_30, %c0_31, %c0_32] : memref<3x4x4xf32, #tpu.memory_space<vmem>>, vector<1x4x4xf32>
    %45 = vector.shape_cast %44 : vector<1x4x4xf32> to vector<4x4xf32>
    %cst_33 = arith.constant dense<0.000000e+00> : vector<4x256xf32>
    %46 = tpu.matmul %45, %36, %cst_33 {dimension_numbers = #tpu.dot_dimension_numbers<[1], [0], [0], [1], [0, 0, 1, 1], [], []>} : vector<4x4xf32>, vector<4x256xf32>, vector<4x256xf32> -> vector<4x256xf32>
    %47 = arith.addf %43, %46 : vector<4x256xf32>
    %48 = vector.broadcast %11 : vector<4x1xf32> to vector<4x256xf32>
    %49 = arith.addf %47, %48 : vector<4x256xf32>
    %cst_34 = arith.constant 2.000000e-01 : f32
    %50 = vector.broadcast %cst_34 : f32 to vector<4x256xf32>
    %51 = arith.mulf %50, %49 : vector<4x256xf32>
    %52 = arith.maximumf %49, %51 : vector<4x256xf32>
    %c0_35 = arith.constant 0 : index
    %c0_36 = arith.constant 0 : index
    %c0_37 = arith.constant 0 : index
    %53 = vector.load %arg5[%c0_35, %c0_36, %c0_37] : memref<1x4x256xf32, #tpu.memory_space<vmem>>, vector<1x4x256xf32>
    %54 = vector.shape_cast %53 : vector<1x4x256xf32> to vector<4x256xf32>
    %55 = vector.shape_cast %52 : vector<4x256xf32> to vector<1x4x256xf32>
    tpu.vector_store %arg5[%c0_35, %c0_36, %c0_37], %55 {strides = array<i32>} : memref<1x4x256xf32, #tpu.memory_space<vmem>>, vector<1x4x256xf32>,
    return
  }
  func.func @transform_0(%arg0: i32, %arg1: i32) -> (i32, i32, i32, i32) {
    %c0_i32 = arith.constant 0 : i32
    %c0_i32_0 = arith.constant 0 : i32
    %c0_i32_1 = arith.constant 0 : i32
    %c0_i32_2 = arith.constant 0 : i32
    return %arg0, %c0_i32, %c0_i32_0, %c0_i32_1 : i32, i32, i32, i32
  }
  func.func @transform_1(%arg0: i32, %arg1: i32) -> (i32, i32, i32) {
    %c0_i32 = arith.constant 0 : i32
    %c0_i32_0 = arith.constant 0 : i32
    %c0_i32_1 = arith.constant 0 : i32
    %c0_i32_2 = arith.constant 0 : i32
    return %c0_i32, %c0_i32_0, %c0_i32_1 : i32, i32, i32
  }
  func.func @transform_2(%arg0: i32, %arg1: i32) -> (i32, i32, i32) {
    %c0_i32 = arith.constant 0 : i32
    %c0_i32_0 = arith.constant 0 : i32
    return %arg0, %c0_i32, %arg1 : i32, i32, i32
  }
  func.func @transform_3(%arg0: i32, %arg1: i32) -> (i32, i32, i32) {
    %c0_i32 = arith.constant 0 : i32
    %c0_i32_0 = arith.constant 0 : i32
    return %arg0, %c0_i32, %arg1 : i32, i32, i32
  }
}

</mosaic_0001>

<llo_original>
// kernel: tpu_custom_call.1
$region0: #{tpu_custom_call.1}
  #allocation0 [shape = 'u32[]', space=smem, size = 0x4, offset = 0x4, fixed_abs, tag = 'smem constant byte address 0x4 - core index']
  #allocation1 [shape = 'u32[144,128]{1,0:T(1,128)}', space=vmem, size = 0x12000, scoped, tag = 'internal scratch']
  %s0 = inlined_call_operand.vmem [shape: f32[2,5,4,1], index: 0, kind: input, shape index: {}]
  %s1 = inlined_call_operand.vmem [shape: f32[3,4,4], index: 1, kind: input, shape index: {}]
  %s2 = inlined_call_operand.vmem [shape: f32[2,4,256], index: 2, kind: input, shape index: {}]
  %s3 = inlined_call_operand.hbm [shape: f32[2,4,256], index: 3, kind: output, shape index: {}]
  %s4 = sld [smem:[#allocation0]]
  $region45: #{tpu_custom_call.1} parent=0
    _
  %s6 = ssub.s32 1, %s4
  %s7 = scalar_select 0, %s6, %s4
  $region1: #{tpu_custom_call.1} parent=0
    #allocation2 [shape = 'u8[8192]{0}', space=vmem, size = 0x2000, scoped, tag = 'output window, operand 0']
    #allocation3 [shape = 's32[2]{0}', space=sflag, size = 0x8, scoped, tag = 'scoped memory for tpu_custom_call.1']
    %8 = vsyncpa [#allocation3], 0
    %s9 = scalar_lea.sflag [#allocation3], 1
    %10 = vsyncpa %s9, 0
    loop: start=0, step=1, limit=4
    $region2: #{tpu_custom_call.1} parent=1 // loop_pre_header
      _
    $region3: #{tpu_custom_call.1} parent=1 // loop_header
      %s12 = sphi 0, %s16
      %p13 = scmp.ge.s32.totalorder %s12, 4
      %s19 = sphi 0, %s31
      %s20 = sphi 0, %s27
      %s21 = sphi 0, %s19
      %s22 = sphi 0, %s20
      %s23 = sphi 0, %s21
      %s24 = sphi 0, %s22
      %s34 = sphi 0, %s36
      %s37 = sphi 0, %s34
      %s38 = sphi 0, %s37
      %s54 = sphi 0, %s38
      %s58 = sphi 0, %s58
      %s60 = sphi 0, %s58
      %s61 = sphi 0, %s60
      %s75 = sphi 0, %s61
      %s83 = sphi 0, %s85
      %s86 = sphi 0, %s83
      %s87 = sphi 0, %s86
      %s103 = sphi 0, %s87
      %s111 = sphi 0, %s113
      %s114 = sphi 0, %s111
      %s115 = sphi 0, %s114
      %s131 = sphi 0, %s115
    $region4: #{tpu_custom_call.1} parent=1 // loop_header_branch
      %15 = sbr.rel (%p13) target = $region8
    $region5: #{tpu_custom_call.1} parent=1 // loop_body
      %s17 = ssub.s32 %s12, 1
      %s18 = ssub.s32 %s12, 2
      %s25 = sadd.s32 1, %s20
      %p26 = scmp.ge.s32.totalorder %s25, 1
      %s27 = scalar_select %p26, 0, %s25
      %s28 = sadd.s32 1, %s19
      %s29 = scalar_select %p26, %s28, %s19
      %p30 = scmp.ge.s32.totalorder %s29, 2
      %s31 = scalar_select %p30, 0, %s29
      %s32 = ssub.s32 %s19, %s31
      %p33 = scmp.eq.s32.totalorder %s32, 0
      %s35 = sadd.s32 %s34, 1
      %s36 = scalar_select %p33, %s34, %s35
      %p39 = pneg %p33
      %p40 = scmp.eq.s32.totalorder %s12, 1
      %p41 = por %p39, %p40
      %p42 = scmp.ne.s32.totalorder %s34, %s37
      %p43 = scmp.eq.s32.totalorder %s12, 0
      %p44 = por %p42, %p43
      %p45 = scmp.ne.s32.totalorder %s34, %s37
      %p46 = scmp.eq.s32.totalorder %s17, 1
      %p47 = por %p45, %p46
      %p48 = scmp.ne.s32.totalorder %s37, %s38
      %p49 = scmp.eq.s32.totalorder %s17, 0
      %p50 = por %p48, %p49
      %p51 = scmp.ne.s32.totalorder %s37, %s38
      %p52 = scmp.eq.s32.totalorder %s18, 1
      %p53 = por %p51, %p52
      %p55 = scmp.ne.s32.totalorder %s38, %s54
      %p56 = scmp.eq.s32.totalorder %s18, 0
      %p57 = por %p55, %p56
      %s59 = sadd.s32 %s58, 1
      %p62 = scmp.eq.s32.totalorder %s12, 1
      %p63 = scmp.ne.s32.totalorder %s58, %s60
      %p64 = scmp.eq.s32.totalorder %s12, 0
      %p65 = por %p63, %p64
      %p66 = scmp.ne.s32.totalorder %s58, %s60
      %p67 = scmp.eq.s32.totalorder %s17, 1
      %p68 = por %p66, %p67
      %p69 = scmp.ne.s32.totalorder %s60, %s61
      %p70 = scmp.eq.s32.totalorder %s17, 0
      %p71 = por %p69, %p70
      %p72 = scmp.ne.s32.totalorder %s60, %s61
      %p73 = scmp.eq.s32.totalorder %s18, 1
      %p74 = por %p72, %p73
      %p76 = scmp.ne.s32.totalorder %s61, %s75
      %p77 = scmp.eq.s32.totalorder %s18, 0
      %p78 = por %p76, %p77
      %s79 = ssub.s32 %s19, %s31
      %s80 = ssub.s32 %s20, %s27
      %s81 = sor.u32 %s79, %s80
      %p82 = scmp.eq.s32.totalorder %s81, 0
      %s84 = sadd.s32 %s83, 1
      %s85 = scalar_select %p82, %s83, %s84
      %p88 = pneg %p82
      %p89 = scmp.eq.s32.totalorder %s12, 1
      %p90 = por %p88, %p89
      %p91 = scmp.ne.s32.totalorder %s83, %s86
      %p92 = scmp.eq.s32.totalorder %s12, 0
      %p93 = por %p91, %p92
      %p94 = scmp.ne.s32.totalorder %s83, %s86
      %p95 = scmp.eq.s32.totalorder %s17, 1
      %p96 = por %p94, %p95
      %p97 = scmp.ne.s32.totalorder %s86, %s87
      %p98 = scmp.eq.s32.totalorder %s17, 0
      %p99 = por %p97, %p98
      %p100 = scmp.ne.s32.totalorder %s86, %s87
      %p101 = scmp.eq.s32.totalorder %s18, 1
      %p102 = por %p100, %p101
      %p104 = scmp.ne.s32.totalorder %s87, %s103
      %p105 = scmp.eq.s32.totalorder %s18, 0
      %p106 = por %p104, %p105
      %s107 = ssub.s32 %s19, %s31
      %s108 = ssub.s32 %s20, %s27
      %s109 = sor.u32 %s107, %s108
      %p110 = scmp.eq.s32.totalorder %s109, 0
      %s112 = sadd.s32 %s111, 1
      %s113 = scalar_select %p110, %s111, %s112
      %p116 = pneg %p110
      %p117 = scmp.eq.s32.totalorder %s12, 1
      %p118 = por %p116, %p117
      %p119 = scmp.ne.s32.totalorder %s111, %s114
      %p120 = scmp.eq.s32.totalorder %s12, 0
      %p121 = por %p119, %p120
      %p122 = scmp.ne.s32.totalorder %s111, %s114
      %p123 = scmp.eq.s32.totalorder %s17, 1
      %p124 = por %p122, %p123
      %p125 = scmp.ne.s32.totalorder %s114, %s115
      %p126 = scmp.eq.s32.totalorder %s17, 0
      %p127 = por %p125, %p126
      %p128 = scmp.ne.s32.totalorder %s114, %s115
      %p129 = scmp.eq.s32.totalorder %s18, 1
      %p130 = por %p128, %p129
      %p132 = scmp.ne.s32.totalorder %s115, %s131
      %p133 = scmp.eq.s32.totalorder %s18, 0
      %p134 = por %p132, %p133
      %p135 = scmp.le.s32.totalorder 1, %s12
      %p136 = scmp.lt.s32.totalorder %s12, 3
      %p137 = pnand %p135, %p136
      %p138 = pneg %p137
      // Predicated region
      $region9: #{tpu_custom_call.1} parent=5 // pred_check
        _
      $region10: #{tpu_custom_call.1} parent=5 // pred_check_branch
        %140 = sbr.rel (%p137) target = $region12
      $region11: #{tpu_custom_call.1} parent=5 // pred_region
        %s141 = ssub.s32 %s12, 1
        // Predicated region
        $region13: #{tpu_custom_call.1} parent=11 // pred_check
          %p142 = pneg %p71
        $region14: #{tpu_custom_call.1} parent=11 // pred_check_branch
          %144 = sbr.rel (%p142) target = $region16
        $region15: #{tpu_custom_call.1} parent=11 // pred_region
          _
        $region16: #{tpu_custom_call.1} parent=11 // pred_fallthru
          _
      $region12: #{tpu_custom_call.1} parent=5 // pred_fallthru
        _
      %p145 = scmp.lt.s32.totalorder %s12, 2
      // Predicated region
      $region17: #{tpu_custom_call.1} parent=5 // pred_check
        %p146 = pneg %p145
      $region18: #{tpu_custom_call.1} parent=5 // pred_check_branch
        %148 = sbr.rel (%p146) target = $region20
      $region19: #{tpu_custom_call.1} parent=5 // pred_region
        // Predicated region
        $region21: #{tpu_custom_call.1} parent=19 // pred_check
          %p149 = pneg %p44
        $region22: #{tpu_custom_call.1} parent=19 // pred_check_branch
          %151 = sbr.rel (%p149) target = $region24
        $region23: #{tpu_custom_call.1} parent=19 // pred_region
          %p152 = scmp.lt.s32.totalorder %s19, 1
          %s153 = scalar_select %p152, %s19, 1
          %s154 = smul.addr %s153, 5
          %s155 = smul.addr %s154, 4
          %s156 = scalar_lea.vmem %s0, %s155
        $region24: #{tpu_custom_call.1} parent=19 // pred_fallthru
          _
        // Predicated region
        $region25: #{tpu_custom_call.1} parent=19 // pred_check
          %p157 = pneg %p93
        $region26: #{tpu_custom_call.1} parent=19 // pred_check_branch
          %159 = sbr.rel (%p157) target = $region28
        $region27: #{tpu_custom_call.1} parent=19 // pred_region
          %s160 = smul.u32 2, %s20
          %p161 = scmp.lt.s32.totalorder %s19, 1
          %s162 = scalar_select %p161, %s19, 1
          %p163 = scmp.lt.s32.totalorder %s160, 1
          %s164 = scalar_select %p163, %s160, 1
          %s165 = smul.addr %s162, 2
          %s166 = sadd.s32 %s164, %s165
          %s167 = smul.addr %s166, 4
          %s168 = scalar_lea.vmem %s2, %s167
          %s169 = smul.u32 2, %s20
        $region28: #{tpu_custom_call.1} parent=19 // pred_fallthru
          _
      $region20: #{tpu_custom_call.1} parent=5 // pred_fallthru
        _
      %p170 = scmp.le.s32.totalorder 1, %s12
      %p171 = scmp.lt.s32.totalorder %s12, 3
      %p172 = pnand %p170, %p171
      %p173 = pneg %p172
      // Predicated region
      $region29: #{tpu_custom_call.1} parent=5 // pred_check
        _
      $region30: #{tpu_custom_call.1} parent=5 // pred_check_branch
        %175 = sbr.rel (%p172) target = $region32
      $region31: #{tpu_custom_call.1} parent=5 // pred_region
        %s176 = ssub.s32 %s12, 1
        %p177 = scmp.lt.s32.totalorder %s21, 1
        %s178 = scalar_select %p177, %s21, 1
        %s179 = smul.addr %s178, 5
        %s180 = smul.addr %s179, 4
        %s181 = scalar_lea.vmem %s0, %s180
        %p182 = pneg %p50
        %p183 = pneg %p47
        %p184 = pneg %p71
        %p185 = pneg %p68
        %s186 = smul.u32 2, %s22
        %p187 = scmp.lt.s32.totalorder %s21, 1
        %s188 = scalar_select %p187, %s21, 1
        %p189 = scmp.lt.s32.totalorder %s186, 1
        %s190 = scalar_select %p189, %s186, 1
        %s191 = smul.addr %s188, 2
        %s192 = sadd.s32 %s190, %s191
        %s193 = smul.addr %s192, 4
        %s194 = scalar_lea.vmem %s2, %s193
        %p195 = pneg %p99
        %p196 = pneg %p96
        %p197 = pneg %p127
        %p198 = pneg %p124
        %s199 = sand.u32 %s114, 1
        %s200 = scalar_lea.sflag [#allocation3], %s199
        %s201 = sand.u32 %s114, 1
        %s202 = smul.addr %s201, 8
        %s203 = scalar_lea.vmem [#allocation2], %s202
        %p204 = scmp.lt.s32.totalorder %s21, 1
        %s205 = scalar_select %p204, %s21, 1
        %s206 = smul.addr %s205, 5
        %s207 = smul.addr %s206, 4
        %s208 = scalar_lea.vmem %s0, %s207
        %s209 = smul.u32 2, %s22
        %p210 = scmp.lt.s32.totalorder %s21, 1
        %s211 = scalar_select %p210, %s21, 1
        %p212 = scmp.lt.s32.totalorder %s209, 1
        %s213 = scalar_select %p212, %s209, 1
        %s214 = smul.addr %s211, 2
        %s215 = sadd.s32 %s213, %s214
        %s216 = smul.addr %s215, 4
        %s217 = scalar_lea.vmem %s2, %s216
        %s218 = smul.u32 2, %s22
        %s219 = smul.u32 2, %s22
        %v220 = vld [vmem:[%s217] sm:$0xff]
        %v221 = vld [vmem:[%s208] sm:$0xf]
        %s222 = scalar_lea.vmem %s208, 4
        %v223 = vld [vmem:[%s222] sm:$0xf]
        %s224 = scalar_lea.vmem %s208, 8
        %v225 = vld [vmem:[%s224] sm:$0xf]
        %s226 = scalar_lea.vmem %s208, 12
        %v227 = vld [vmem:[%s226] sm:$0xf]
        %s228 = scalar_lea.vmem %s208, 16
        %v229 = vld [vmem:[%s228] sm:$0xf]
        %v230 = vmul.f32 %v220, %v220
        %v232 = vcombine.high %v230, %v230
        %vm234 = vcmask 1043456
        %v235 = vsel %vm234, %v230, 0.0
        %v236 = vrot.slane %v235, 4
        %v237 = vadd.f32 %v235, %v236
        %v238 = vrot.slane %v237, 2
        %v239 = vadd.f32 %v237, %v238
        %v240 = vrot.slane %v239, 1
        %v241 = vadd.f32 %v239, %v240
        %v242 = vsel %vm234, %v232, 0.0
        %v243 = vrot.slane %v242, 4
        %v244 = vadd.f32 %v242, %v243
        %v245 = vrot.slane %v244, 2
        %v246 = vadd.f32 %v244, %v245
        %v247 = vrot.slane %v246, 1
        %v248 = vadd.f32 %v246, %v247
        %v249 = vmax.f32 %v241, 1e-05
        %v250 = vmax.f32 %v248, 1e-05
        %v251 = vrsqrt.pop %v249
        %v252 = vrsqrt.pop %v250
        %v253 = vmul.f32 %v220, 0.2
        %v254 = vmax.f32 %v220, %v253
        %v257 = vcombine.low %v251, %v252
        %v259 = vmul.f32 %v220, %v257
        %261 = vset.pattern.permute.xlu0 0
        %262 = vperm.xlu0 %261, %v225
        %v263 = vpop.permute.xlu0 %262
        %v265 = vunpack.c.l.s4 839922192
        %v266 = vunpack.c.0.s8 %v265
        %v267 = vlaneseq
        %v268 = vshrl.u32 %v267, 7
        %v269 = vsub.s32 %v266, %v268
        %v270 = vrot.slane %v263, %v269
        %v272 = vmul.f32 %v259, %v270
        %274 = vset.pattern.permute.xlu0 0
        %275 = vperm.xlu0 %274, %v227
        %v276 = vpop.permute.xlu0 %275
        %v278 = vunpack.c.l.s4 839922192
        %v279 = vunpack.c.0.s8 %v278
        %v280 = vlaneseq
        %v281 = vshrl.u32 %v280, 7
        %v282 = vsub.s32 %v279, %v281
        %v283 = vrot.slane %v276, %v282
        %v285 = vadd.f32 %v272, %v283
        %v286 = vmul.f32 %v285, 0.2
        %v287 = vmax.f32 %v285, %v286
        %289 = vset.pattern.permute.xlu0 0
        %290 = vperm.xlu0 %289, %v221
        %v291 = vpop.permute.xlu0 %290
        %v293 = vunpack.c.l.s4 839922192
        %v294 = vunpack.c.0.s8 %v293
        %v295 = vlaneseq
        %v296 = vshrl.u32 %v295, 7
        %v297 = vsub.s32 %v294, %v296
        %v298 = vrot.slane %v291, %v297
        %v300 = vmul.f32 %v220, %v298
        %302 = vset.pattern.permute.xlu0 0
        %303 = vperm.xlu0 %302, %v223
        %v304 = vpop.permute.xlu0 %303
        %v306 = vunpack.c.l.s4 839922192
        %v307 = vunpack.c.0.s8 %v306
        %v308 = vlaneseq
        %v309 = vshrl.u32 %v308, 7
        %v310 = vsub.s32 %v307, %v309
        %v311 = vrot.slane %v304, %v310
        %v313 = vadd.f32 %v300, %v311
        %v314 = vmul.f32 %v313, 0.2
        %v315 = vmax.f32 %v313, %v314
        %v316 = vld [vmem:[%s1] sm:$0xf]
        %s317 = scalar_lea.vmem %s1, 4
        %v318 = vld [vmem:[%s317] sm:$0xf]
        %v320 = vcombine.high %v287, %v287
        %vm321 = vcmask 31744
        %v323 = vsel %vm321, %v318, 0
        %v325 = vsel %vm234, %v287, 0
        %v327 = vsel %vm234, %v320, 0
        %329 = vmatprep.subr.mxu0 %v327
        %330 = vmatpush1.msra.mxu0 %v325
        %331 = vmatprep.subr.mxu0 0.0
        %332 = vmatpush1.msra.mxu0 0.0
        %333 = vmatprep.subr.mxu0 0.0
        %334 = vmatpush1.msra.mxu0 0.0
        %335 = vmatprep.subr.mxu0 0.0
        %336 = vmatpush1.msra.mxu0 0.0
        %337 = vmatprep.subr.mxu0 0.0
        %338 = vmatpush1.msra.mxu0 0.0
        %339 = vmatprep.subr.mxu0 0.0
        %340 = vmatpush1.msra.mxu0 0.0
        %341 = vmatprep.subr.mxu0 0.0
        %342 = vmatpush1.msra.mxu0 0.0
        %343 = vmatprep.subr.mxu0 0.0
        %344 = vmatpush1.msra.mxu0 0.0
        %345 = vmatprep.subr.mxu0 0.0
        %346 = vmatpush1.msra.mxu0 0.0
        %347 = vmatprep.subr.mxu0 0.0
        %348 = vmatpush1.msra.mxu0 0.0
        %349 = vmatprep.subr.mxu0 0.0
        %350 = vmatpush1.msra.mxu0 0.0
        %351 = vmatprep.subr.mxu0 0.0
        %352 = vmatpush1.msra.mxu0 0.0
        %353 = vmatprep.subr.mxu0 0.0
        %354 = vmatpush1.msra.mxu0 0.0
        %355 = vmatprep.subr.mxu0 0.0
        %356 = vmatpush1.msra.mxu0 0.0
        %357 = vmatprep.subr.mxu0 0.0
        %358 = vmatpush1.msra.mxu0 0.0
        %359 = vmatprep.subr.mxu0 0.0
        %360 = vmatpush1.msra.mxu0 0.0
        %361 = vmatprep.subr.mxu0 0.0
        %362 = vmatpush1.msra.mxu0 0.0
        %363 = vmatprep.subr.mxu0 0.0
        %364 = vmatpush1.msra.mxu0 0.0
        %365 = vmatprep.subr.mxu0 0.0
        %366 = vmatpush1.msra.mxu0 0.0
        %367 = vmatprep.subr.mxu0 0.0
        %368 = vmatpush1.msra.mxu0 0.0
        %369 = vmatprep.subr.mxu0 0.0
        %370 = vmatpush1.msra.mxu0 0.0
        %371 = vmatprep.subr.mxu0 0.0
        %372 = vmatpush1.msra.mxu0 0.0
        %373 = vmatprep.subr.mxu0 0.0
        %374 = vmatpush1.msra.mxu0 0.0
        %375 = vmatprep.subr.mxu0 0.0
        %376 = vmatpush1.msra.mxu0 0.0
        %377 = vmatprep.subr.mxu0 0.0
        %378 = vmatpush1.msra.mxu0 0.0
        %379 = vmatprep.subr.mxu0 0.0
        %380 = vmatpush1.msra.mxu0 0.0
        %381 = vmatprep.subr.mxu0 0.0
        %382 = vmatpush1.msra.mxu0 0.0
        %383 = vmatprep.subr.mxu0 0.0
        %384 = vmatpush1.msra.mxu0 0.0
        %385 = vmatprep.subr.mxu0 0.0
        %386 = vmatpush1.msra.mxu0 0.0
        %387 = vmatprep.subr.mxu0 0.0
        %388 = vmatpush1.msra.mxu0 0.0
        %389 = vmatprep.subr.mxu0 0.0
        %390 = vmatpush1.msra.mxu0 0.0
        %391 = vmatprep.subr.mxu0 0.0
        %392 = vmatpush1.msra.mxu0 0.0
        %393 = vmatprep.mubr.f32.mxu0 0.0
        %394 = vmatmul.mubr.f32.gmra.mrb[0].mxu0 %v323
        %v395 = vpop.f32.mrb[0].mxu0
        %v396 = vadd.f32 0.0, %v395
        %v397 = vpop.f32.mrb[0].mxu0
        %v398 = vadd.f32 0.0, %v397
        %399 = vdwg.mxu0
        %v401 = vcombine.high %v254, %v254
        %v403 = vsel %vm321, %v316, 0
        %v405 = vsel %vm234, %v254, 0
        %v407 = vsel %vm234, %v401, 0
        %409 = vmatprep.subr.mxu0 %v407
        %410 = vmatpush1.msra.mxu0 %v405
        %411 = vmatprep.subr.mxu0 0.0
        %412 = vmatpush1.msra.mxu0 0.0
        %413 = vmatprep.subr.mxu0 0.0
        %414 = vmatpush1.msra.mxu0 0.0
        %415 = vmatprep.subr.mxu0 0.0
        %416 = vmatpush1.msra.mxu0 0.0
        %417 = vmatprep.subr.mxu0 0.0
        %418 = vmatpush1.msra.mxu0 0.0
        %419 = vmatprep.subr.mxu0 0.0
        %420 = vmatpush1.msra.mxu0 0.0
        %421 = vmatprep.subr.mxu0 0.0
        %422 = vmatpush1.msra.mxu0 0.0
        %423 = vmatprep.subr.mxu0 0.0
        %424 = vmatpush1.msra.mxu0 0.0
        %425 = vmatprep.subr.mxu0 0.0
        %426 = vmatpush1.msra.mxu0 0.0
        %427 = vmatprep.subr.mxu0 0.0
        %428 = vmatpush1.msra.mxu0 0.0
        %429 = vmatprep.subr.mxu0 0.0
        %430 = vmatpush1.msra.mxu0 0.0
        %431 = vmatprep.subr.mxu0 0.0
        %432 = vmatpush1.msra.mxu0 0.0
        %433 = vmatprep.subr.mxu0 0.0
        %434 = vmatpush1.msra.mxu0 0.0
        %435 = vmatprep.subr.mxu0 0.0
        %436 = vmatpush1.msra.mxu0 0.0
        %437 = vmatprep.subr.mxu0 0.0
        %438 = vmatpush1.msra.mxu0 0.0
        %439 = vmatprep.subr.mxu0 0.0
        %440 = vmatpush1.msra.mxu0 0.0
        %441 = vmatprep.subr.mxu0 0.0
        %442 = vmatpush1.msra.mxu0 0.0
        %443 = vmatprep.subr.mxu0 0.0
        %444 = vmatpush1.msra.mxu0 0.0
        %445 = vmatprep.subr.mxu0 0.0
        %446 = vmatpush1.msra.mxu0 0.0
        %447 = vmatprep.subr.mxu0 0.0
        %448 = vmatpush1.msra.mxu0 0.0
        %449 = vmatprep.subr.mxu0 0.0
        %450 = vmatpush1.msra.mxu0 0.0
        %451 = vmatprep.subr.mxu0 0.0
        %452 = vmatpush1.msra.mxu0 0.0
        %453 = vmatprep.subr.mxu0 0.0
        %454 = vmatpush1.msra.mxu0 0.0
        %455 = vmatprep.subr.mxu0 0.0
        %456 = vmatpush1.msra.mxu0 0.0
        %457 = vmatprep.subr.mxu0 0.0
        %458 = vmatpush1.msra.mxu0 0.0
        %459 = vmatprep.subr.mxu0 0.0
        %460 = vmatpush1.msra.mxu0 0.0
        %461 = vmatprep.subr.mxu0 0.0
        %462 = vmatpush1.msra.mxu0 0.0
        %463 = vmatprep.subr.mxu0 0.0
        %464 = vmatpush1.msra.mxu0 0.0
        %465 = vmatprep.subr.mxu0 0.0
        %466 = vmatpush1.msra.mxu0 0.0
        %467 = vmatprep.subr.mxu0 0.0
        %468 = vmatpush1.msra.mxu0 0.0
        %469 = vmatprep.subr.mxu0 0.0
        %470 = vmatpush1.msra.mxu0 0.0
        %471 = vmatprep.subr.mxu0 0.0
        %472 = vmatpush1.msra.mxu0 0.0
        %473 = vmatprep.mubr.f32.mxu0 0.0
        %474 = vmatmul.mubr.f32.gmra.mrb[0].mxu0 %v403
        %v475 = vpop.f32.mrb[0].mxu0
        %v476 = vadd.f32 %v396, %v475
        %v477 = vpop.f32.mrb[0].mxu0
        %v478 = vadd.f32 %v398, %v477
        %479 = vdwg.mxu0
        %s480 = scalar_lea.vmem %s1, 8
        %v481 = vld [vmem:[%s480] sm:$0xf]
        %v483 = vcombine.high %v315, %v315
        %v485 = vsel %vm321, %v481, 0
        %v487 = vsel %vm234, %v315, 0
        %v489 = vsel %vm234, %v483, 0
        %491 = vmatprep.subr.mxu0 %v489
        %492 = vmatpush1.msra.mxu0 %v487
        %493 = vmatprep.subr.mxu0 0.0
        %494 = vmatpush1.msra.mxu0 0.0
        %495 = vmatprep.subr.mxu0 0.0
        %496 = vmatpush1.msra.mxu0 0.0
        %497 = vmatprep.subr.mxu0 0.0
        %498 = vmatpush1.msra.mxu0 0.0
        %499 = vmatprep.subr.mxu0 0.0
        %500 = vmatpush1.msra.mxu0 0.0
        %501 = vmatprep.subr.mxu0 0.0
        %502 = vmatpush1.msra.mxu0 0.0
        %503 = vmatprep.subr.mxu0 0.0
        %504 = vmatpush1.msra.mxu0 0.0
        %505 = vmatprep.subr.mxu0 0.0
        %506 = vmatpush1.msra.mxu0 0.0
        %507 = vmatprep.subr.mxu0 0.0
        %508 = vmatpush1.msra.mxu0 0.0
        %509 = vmatprep.subr.mxu0 0.0
        %510 = vmatpush1.msra.mxu0 0.0
        %511 = vmatprep.subr.mxu0 0.0
        %512 = vmatpush1.msra.mxu0 0.0
        %513 = vmatprep.subr.mxu0 0.0
        %514 = vmatpush1.msra.mxu0 0.0
        %515 = vmatprep.subr.mxu0 0.0
        %516 = vmatpush1.msra.mxu0 0.0
        %517 = vmatprep.subr.mxu0 0.0
        %518 = vmatpush1.msra.mxu0 0.0
        %519 = vmatprep.subr.mxu0 0.0
        %520 = vmatpush1.msra.mxu0 0.0
        %521 = vmatprep.subr.mxu0 0.0
        %522 = vmatpush1.msra.mxu0 0.0
        %523 = vmatprep.subr.mxu0 0.0
        %524 = vmatpush1.msra.mxu0 0.0
        %525 = vmatprep.subr.mxu0 0.0
        %526 = vmatpush1.msra.mxu0 0.0
        %527 = vmatprep.subr.mxu0 0.0
        %528 = vmatpush1.msra.mxu0 0.0
        %529 = vmatprep.subr.mxu0 0.0
        %530 = vmatpush1.msra.mxu0 0.0
        %531 = vmatprep.subr.mxu0 0.0
        %532 = vmatpush1.msra.mxu0 0.0
        %533 = vmatprep.subr.mxu0 0.0
        %534 = vmatpush1.msra.mxu0 0.0
        %535 = vmatprep.subr.mxu0 0.0
        %536 = vmatpush1.msra.mxu0 0.0
        %537 = vmatprep.subr.mxu0 0.0
        %538 = vmatpush1.msra.mxu0 0.0
        %539 = vmatprep.subr.mxu0 0.0
        %540 = vmatpush1.msra.mxu0 0.0
        %541 = vmatprep.subr.mxu0 0.0
        %542 = vmatpush1.msra.mxu0 0.0
        %543 = vmatprep.subr.mxu0 0.0
        %544 = vmatpush1.msra.mxu0 0.0
        %545 = vmatprep.subr.mxu0 0.0
        %546 = vmatpush1.msra.mxu0 0.0
        %547 = vmatprep.subr.mxu0 0.0
        %548 = vmatpush1.msra.mxu0 0.0
        %549 = vmatprep.subr.mxu0 0.0
        %550 = vmatpush1.msra.mxu0 0.0
        %551 = vmatprep.subr.mxu0 0.0
        %552 = vmatpush1.msra.mxu0 0.0
        %553 = vmatprep.subr.mxu0 0.0
        %554 = vmatpush1.msra.mxu0 0.0
        %555 = vmatprep.mubr.f32.mxu0 0.0
        %556 = vmatmul.mubr.f32.gmra.mrb[0].mxu0 %v485
        %v557 = vpop.f32.mrb[0].mxu0
        %v558 = vadd.f32 0.0, %v557
        %v559 = vpop.f32.mrb[0].mxu0
        %v560 = vadd.f32 0.0, %v559
        %561 = vdwg.mxu0
        %v562 = vadd.f32 %v476, %v558
        %v563 = vadd.f32 %v478, %v560
        %565 = vset.pattern.permute.xlu0 0
        %566 = vperm.xlu0 %565, %v229
        %v567 = vpop.permute.xlu0 %566
        %v569 = vadd.f32 %v562, %v567
        %v570 = vadd.f32 %v563, %v567
        %v571 = vmul.f32 %v569, 0.2
        %v572 = vmul.f32 %v570, 0.2
        %v573 = vmax.f32 %v569, %v571
        %v574 = vmax.f32 %v570, %v572
        %v577 = vcombine.low %v573, %v574
        %579 = vst [vmem:[%s203] sm:$0xff] %v577
        %s580 = sand.u32 %s114, 1
        %s581 = scalar_lea.sflag [#allocation3], %s580
        %s582 = sand.u32 %s114, 1
        %s583 = smul.addr %s582, 8
        %s584 = scalar_lea.vmem [#allocation2], %s583
        // Predicated region
        $region33: #{tpu_custom_call.1} parent=31 // pred_check
          %p585 = pneg %p124
        $region34: #{tpu_custom_call.1} parent=31 // pred_check_branch
          %587 = sbr.rel (%p585) target = $region36
        $region35: #{tpu_custom_call.1} parent=31 // pred_region
          %s588 = smul.u32 2, %s22
          %s590 = ssub.s32 128, 128
          %591 = vsyncadd %s581, %s590
          %s592 = smul.addr %s21, 2
          %s593 = sadd.s32 %s588, %s592
          %s594 = smul.addr %s593, 64
          %s595 = scalar_lea.hbm %s3, %s594
          %s597 = sshll.u32 %s584, 4
          %s598 = int_to_ptr.vmem [resolvable:$true] %s597
          %600 = dma.vmem_to_hbm [thread:$0]  %s598, 128, %s595, %s581
        $region36: #{tpu_custom_call.1} parent=31 // pred_fallthru
          _
      $region32: #{tpu_custom_call.1} parent=5 // pred_fallthru
        _
      %p601 = scmp.le.s32.totalorder 2, %s12
      // Predicated region
      $region37: #{tpu_custom_call.1} parent=5 // pred_check
        %p602 = pneg %p601
      $region38: #{tpu_custom_call.1} parent=5 // pred_check_branch
        %604 = sbr.rel (%p602) target = $region40
      $region39: #{tpu_custom_call.1} parent=5 // pred_region
        %s605 = ssub.s32 %s12, 2
        // Predicated region
        $region41: #{tpu_custom_call.1} parent=39 // pred_check
          %p606 = pneg %p130
        $region42: #{tpu_custom_call.1} parent=39 // pred_check_branch
          %608 = sbr.rel (%p606) target = $region44
        $region43: #{tpu_custom_call.1} parent=39 // pred_region
          %s609 = sand.u32 %s115, 1
          %s610 = scalar_lea.sflag [#allocation3], %s609
          %s611 = sand.u32 %s115, 1
          %s612 = smul.addr %s611, 8
          %s613 = scalar_lea.vmem [#allocation2], %s612
          %614 = dma.done %s610, 128
        $region44: #{tpu_custom_call.1} parent=39 // pred_fallthru
          _
      $region40: #{tpu_custom_call.1} parent=5 // pred_fallthru
        _
    $region6: #{tpu_custom_call.1} parent=1 // loop_footer
      %s16 = sadd.s32 1, %s12
    $region7: #{tpu_custom_call.1} parent=1 // loop_footer_branch
      %11 = sbr.rel target = $region3
    $region8: #{tpu_custom_call.1} parent=1 // loop_exit
      _
    %615 = vsyncpa [#allocation3], 1
    %s616 = scalar_lea.sflag [#allocation3], 1
    %617 = vsyncpa %s616, 1

</llo_original>
